<compile_context>
chip_gen: v7x
topology: tpu7x:2x2x1
jax: 0.10.0
libtpu: 0.0.40
codegen_flags: <defaults>
</compile_context>

<pallas_src>
import jax
import jax.numpy as jnp
from jax.experimental import pallas as pl
from jax.experimental.pallas import tpu as pltpu


IN_DIM = 128
HID_DIM = 64
OUT_DIM = 1


def _round_up(x: int, m: int) -> int:
    return ((x + m - 1) // m) * m


def gcn_mlp_kernel(x_ref, w1_ref, b1_ref, w2_ref, b2_ref, o_ref):
    # x_ref: (tn, 128) tile of node embeddings (bf16 or f32)
    # w1_ref: (128, 64) [in, out]; b1_ref: (1, 64) f32
    # w2_ref: (1, 64) f32 (linear2 weight row); b2_ref: (1, 1) f32 in SMEM
    x = x_ref[...]
    w1 = w1_ref[...]

    # linear1 on the MXU, f32 accumulation.
    h = jnp.dot(x, w1, preferred_element_type=jnp.float32) + b1_ref[...]
    # relu
    h = jnp.maximum(h, 0.0)
    # dropout in eval mode == identity (module is run after model.eval()).

    # linear2: a (tn,64)@(64,1) matvec wastes the MXU; do it on the VPU
    # (broadcast multiply) + XLU (lane reduction) instead.
    z = jnp.sum(h * w2_ref[...], axis=-1, keepdims=True) + b2_ref[0, 0]

    # sigmoid: exp on the EUP, reciprocal also on the EUP (approx vrcp) so the
    # whole epilogue stays off the VALU slot.
    o_ref[...] = pl.reciprocal(1.0 + jnp.exp(-z), approx=True).astype(o_ref.dtype)


def gcn_forward(embeddings, w1, b1, w2_row, b2, *, tn=1024,
                compute_dtype=jnp.bfloat16):
    """embeddings: [N,128] f32; w1: [128,64]; b1: [1,64]; w2_row: [1,64]; b2: [1,1]."""
    N, D = embeddings.shape
    assert D == IN_DIM

    # Effective node tile: large enough to amortize per-step overhead, clamped
    # and 8-aligned so small/ragged N still works (tail rows are padded and
    # sliced off after the call).
    tn_eff = max(8, min(int(tn), _round_up(N, 8)))
    tn_eff = _round_up(tn_eff, 8)
    n_pad = _round_up(N, tn_eff)

    x = embeddings.astype(compute_dtype)
    if n_pad != N:
        x = jnp.pad(x, ((0, n_pad - N), (0, 0)))
    w1c = w1.astype(compute_dtype)

    grid = (n_pad // tn_eff,)

    out = pl.pallas_call(
        gcn_mlp_kernel,
        out_shape=jax.ShapeDtypeStruct((n_pad, OUT_DIM), jnp.float32),
        grid=grid,
        in_specs=[
            pl.BlockSpec((tn_eff, IN_DIM), lambda i: (i, 0)),        # x tile
            pl.BlockSpec((IN_DIM, HID_DIM), lambda i: (0, 0)),       # w1 (resident)
            pl.BlockSpec((1, HID_DIM), lambda i: (0, 0)),            # b1 (resident)
            pl.BlockSpec((1, HID_DIM), lambda i: (0, 0)),            # w2 row (resident)
            pl.BlockSpec(memory_space=pltpu.MemorySpace.SMEM),       # b2 scalar
        ],
        out_specs=pl.BlockSpec((tn_eff, OUT_DIM), lambda i: (i, 0)),
        compiler_params=pltpu.CompilerParams(
            dimension_semantics=("parallel",),
        ),
    )(x, w1c, b1, w2_row, b2)

    return out[:N]


def init_params(key):
    """Deterministic init mimicking nn.Linear default (uniform(+-1/sqrt(fan_in)))."""
    k1, k2, k3, k4 = jax.random.split(key, 4)
    bound1 = 1.0 / jnp.sqrt(float(IN_DIM))
    bound2 = 1.0 / jnp.sqrt(float(HID_DIM))
    # linear1 stored pre-transposed [in, out]; linear2 kept as its native
    # [out=1, in=64] row (used as a broadcast row in the kernel).
    w1 = jax.random.uniform(k1, (IN_DIM, HID_DIM), jnp.float32, -bound1, bound1)
    b1 = jax.random.uniform(k2, (1, HID_DIM), jnp.float32, -bound1, bound1)
    w2_row = jax.random.uniform(k3, (1, HID_DIM), jnp.float32, -bound2, bound2)
    b2 = jax.random.uniform(k4, (1, 1), jnp.float32, -bound2, bound2)
    return w1, b1, w2_row, b2


if __name__ == "__main__":
    key = jax.random.PRNGKey(0)
    k_emb, k_params = jax.random.split(key)
    w1, b1, w2_row, b2 = init_params(k_params)

    def ref_forward(emb):
        h = jnp.maximum(emb @ w1 + b1, 0.0)
        return jax.nn.sigmoid(h @ w2_row.T + b2)

    # Case 1: small ragged N, single padded tile, default bf16 compute.
    N1 = 300
    emb1 = jax.random.normal(jax.random.fold_in(k_emb, 1), (N1, IN_DIM), jnp.float32)
    out1 = jax.block_until_ready(gcn_forward(emb1, w1, b1, w2_row, b2))
    ref1 = ref_forward(emb1)
    assert out1.shape == (N1, OUT_DIM)
    assert jnp.max(jnp.abs(out1 - ref1)) < 2e-2, "bf16 path mismatch"

    # Case 2: multi-step grid with tail padding, f32 compute path.
    N2 = 1000
    emb2 = jax.random.normal(jax.random.fold_in(k_emb, 2), (N2, IN_DIM), jnp.float32)
    out2 = jax.block_until_ready(
        gcn_forward(emb2, w1, b1, w2_row, b2, tn=256, compute_dtype=jnp.float32))
    ref2 = ref_forward(emb2)
    assert out2.shape == (N2, OUT_DIM)
    assert jnp.max(jnp.abs(out2 - ref2)) < 1e-2, "f32 path mismatch"

    print("KERNEL_OK")
</pallas_src>

<mosaic_0001>
module attributes {stable_mosaic.version = 11 : i64} {
  func.func @gcn_mlp_kernel(%arg0: i32, %arg1: memref<304x128xbf16, #tpu.memory_space<vmem>>, %arg2: memref<128x64xbf16, #tpu.memory_space<vmem>>, %arg3: memref<1x64xf32, #tpu.memory_space<vmem>>, %arg4: memref<1x64xf32, #tpu.memory_space<vmem>>, %arg5: memref<1x1xf32, #tpu.memory_space<smem>>, %arg6: memref<304x1xf32, #tpu.memory_space<vmem>>) attributes {dimension_semantics = [#tpu.dimension_semantics<parallel>], iteration_bounds = array<i64: 1>, scalar_prefetch = 0 : i64, scratch_operands = 0 : i64, tpu.core_type = #tpu.core_type<tc>, window_params = [{transform_indices = @transform_0, window_bounds = array<i64: 304, 128>}, {pipeline_mode = #tpu.pipeline_mode<synchronous>, transform_indices = @transform_1, window_bounds = array<i64: 128, 64>}, {pipeline_mode = #tpu.pipeline_mode<synchronous>, transform_indices = @transform_2, window_bounds = array<i64: 1, 64>}, {pipeline_mode = #tpu.pipeline_mode<synchronous>, transform_indices = @transform_3, window_bounds = array<i64: 1, 64>}, {transform_indices = @transform_4, window_bounds = array<i64: 1, 1>}, {transform_indices = @transform_5, window_bounds = array<i64: 304, 1>}]} {
    %c0 = arith.constant 0 : index
    %c0_0 = arith.constant 0 : index
    %0 = vector.load %arg1[%c0, %c0_0] : memref<304x128xbf16, #tpu.memory_space<vmem>>, vector<304x128xbf16>
    %c0_1 = arith.constant 0 : index
    %c0_2 = arith.constant 0 : index
    %1 = vector.load %arg2[%c0_1, %c0_2] : memref<128x64xbf16, #tpu.memory_space<vmem>>, vector<128x64xbf16>
    %cst = arith.constant dense<0.000000e+00> : vector<304x64xf32>
    %2 = tpu.matmul %0, %1, %cst {dimension_numbers = #tpu.dot_dimension_numbers<[1], [0], [0], [1], [0, 0, 1, 1], [], []>} : vector<304x128xbf16>, vector<128x64xbf16>, vector<304x64xf32> -> vector<304x64xf32>
    %c0_3 = arith.constant 0 : index
    %c0_4 = arith.constant 0 : index
    %3 = vector.load %arg3[%c0_3, %c0_4] : memref<1x64xf32, #tpu.memory_space<vmem>>, vector<1x64xf32>
    %4 = vector.broadcast %3 : vector<1x64xf32> to vector<304x64xf32>
    %5 = arith.addf %2, %4 : vector<304x64xf32>
    %cst_5 = arith.constant 0.000000e+00 : f32
    %6 = vector.broadcast %cst_5 : f32 to vector<304x64xf32>
    %7 = arith.maximumf %5, %6 : vector<304x64xf32>
    %c0_6 = arith.constant 0 : index
    %c0_7 = arith.constant 0 : index
    %8 = vector.load %arg4[%c0_6, %c0_7] : memref<1x64xf32, #tpu.memory_space<vmem>>, vector<1x64xf32>
    %9 = vector.broadcast %8 : vector<1x64xf32> to vector<304x64xf32>
    %10 = arith.mulf %7, %9 : vector<304x64xf32>
    %cst_8 = arith.constant dense<0.000000e+00> : vector<304xf32>
    %11 = vector.multi_reduction <add>, %10, %cst_8 [1] : vector<304x64xf32> to vector<304xf32>
    %12 = vector.shape_cast %11 : vector<304xf32> to vector<304x1xf32>
    %c0_9 = arith.constant 0 : index
    %c0_10 = arith.constant 0 : index
    %13 = memref.load %arg5[%c0_9, %c0_10] : memref<1x1xf32, #tpu.memory_space<smem>>
    %14 = vector.broadcast %13 : f32 to vector<304x1xf32>
    %15 = arith.addf %12, %14 : vector<304x1xf32>
    %cst_11 = arith.constant 0.000000e+00 : f32
    %16 = vector.broadcast %cst_11 : f32 to vector<304x1xf32>
    %17 = arith.subf %16, %15 : vector<304x1xf32>
    %18 = math.exp %17 : vector<304x1xf32>
    %cst_12 = arith.constant 1.000000e+00 : f32
    %19 = vector.broadcast %cst_12 : f32 to vector<304x1xf32>
    %20 = arith.addf %19, %18 : vector<304x1xf32>
    %21 = tpu.reciprocal %20 {approx = true} : vector<304x1xf32> -> vector<304x1xf32>
    %c0_13 = arith.constant 0 : index
    %c0_14 = arith.constant 0 : index
    %22 = vector.load %arg6[%c0_13, %c0_14] : memref<304x1xf32, #tpu.memory_space<vmem>>, vector<304x1xf32>
    tpu.vector_store %arg6[%c0_13, %c0_14], %21 {strides = array<i32>} : memref<304x1xf32, #tpu.memory_space<vmem>>, vector<304x1xf32>,
    return
  }
  func.func @transform_0(%arg0: i32) -> (i32, i32) {
    %c0_i32 = arith.constant 0 : i32
    %c0_i32_0 = arith.constant 0 : i32
    return %arg0, %c0_i32 : i32, i32
  }
  func.func @transform_1(%arg0: i32) -> (i32, i32) {
    %c0_i32 = arith.constant 0 : i32
    %c0_i32_0 = arith.constant 0 : i32
    %c0_i32_1 = arith.constant 0 : i32
    return %c0_i32, %c0_i32_0 : i32, i32
  }
  func.func @transform_2(%arg0: i32) -> (i32, i32) {
    %c0_i32 = arith.constant 0 : i32
    %c0_i32_0 = arith.constant 0 : i32
    %c0_i32_1 = arith.constant 0 : i32
    return %c0_i32, %c0_i32_0 : i32, i32
  }
  func.func @transform_3(%arg0: i32) -> (i32, i32) {
    %c0_i32 = arith.constant 0 : i32
    %c0_i32_0 = arith.constant 0 : i32
    %c0_i32_1 = arith.constant 0 : i32
    return %c0_i32, %c0_i32_0 : i32, i32
  }
  func.func @transform_4(%arg0: i32) -> (i32, i32) {
    %c0_i32 = arith.constant 0 : i32
    %c0_i32_0 = arith.constant 0 : i32
    %c0_i32_1 = arith.constant 0 : i32
    return %c0_i32, %c0_i32_0 : i32, i32
  }
  func.func @transform_5(%arg0: i32) -> (i32, i32) {
    %c0_i32 = arith.constant 0 : i32
    %c0_i32_0 = arith.constant 0 : i32
    return %arg0, %c0_i32 : i32, i32
  }
}

</mosaic_0001>

<llo_original>
// kernel: tpu_custom_call.1
$region0: #{tpu_custom_call.1}
  #allocation0 [shape = 'u32[]', space=smem, size = 0x4, offset = 0x4, fixed_abs, tag = 'smem constant byte address 0x4 - core index']
  #allocation1 [shape = 'u32[144,128]{1,0:T(1,128)}', space=vmem, size = 0x12000, scoped, tag = 'internal scratch']
  #allocation2 [shape = 'f32[1,1]{1,0:T(1,128)S(6)}', space=smem, size = 0x200, scoped, tag = 'scoped memory for tpu_custom_call.1']
  %s0 = inlined_call_operand.hbm [shape: bf16[304,128], index: 0, kind: input, shape index: {}]
  %s1 = inlined_call_operand.vmem [shape: bf16[128,64], index: 1, kind: input, shape index: {}]
  %s2 = inlined_call_operand.vmem [shape: f32[1,64], index: 2, kind: input, shape index: {}]
  %s3 = inlined_call_operand.vmem [shape: f32[1,64], index: 3, kind: input, shape index: {}]
  %s4 = inlined_call_operand.<no memory space> [shape: f32[1,1], index: 4, kind: input, shape index: {}]
  %s5 = inlined_call_operand.vmem [shape: f32[304,1], index: 5, kind: output, shape index: {}]
  %s6 = sld [smem:[#allocation0]]
  $region34: #{tpu_custom_call.1} parent=0
    _
  %s8 = ssub.s32 1, %s6
  %s9 = scalar_select 0, %s8, %s6
  %10 = sst [smem:[#allocation2]] %s4
  $region1: #{tpu_custom_call.1} parent=0
    #allocation3 [shape = 'u8[77824]{0}', space=vmem, size = 0x13000, scoped, tag = 'input window, operand 0, single buffered']
    #allocation4 [shape = 's32[1]{0}', space=sflag, size = 0x4, scoped, tag = 'scoped memory for tpu_custom_call.1']
    %11 = vsyncpa [#allocation4], 0
    // Predicated region
    $region2: #{tpu_custom_call.1} parent=1 // pred_check
      _
    $region3: #{tpu_custom_call.1} parent=1 // pred_check_branch
      %13 = sbr.rel (0) target = $region5
    $region4: #{tpu_custom_call.1} parent=1 // pred_region
      %s15 = ssub.s32 2432, 2432
      %16 = vsyncadd [#allocation4], %s15
      %s17 = sshll.u32 [#allocation3], 4
      %s18 = int_to_ptr.vmem [resolvable:$true] %s17
      %23 = dma.hbm_to_vmem [thread:$0]  %s0, 2432, %s18, [#allocation4], 64, 64, 4
    $region5: #{tpu_custom_call.1} parent=1 // pred_fallthru
      _
    // Predicated region
    $region6: #{tpu_custom_call.1} parent=1 // pred_check
      _
    $region7: #{tpu_custom_call.1} parent=1 // pred_check_branch
      %25 = sbr.rel (0) target = $region9
    $region8: #{tpu_custom_call.1} parent=1 // pred_region
      _
    $region9: #{tpu_custom_call.1} parent=1 // pred_fallthru
      _
    // Predicated region
    $region10: #{tpu_custom_call.1} parent=1 // pred_check
      _
    $region11: #{tpu_custom_call.1} parent=1 // pred_check_branch
      %27 = sbr.rel (0) target = $region13
    $region12: #{tpu_custom_call.1} parent=1 // pred_region
      _
    $region13: #{tpu_custom_call.1} parent=1 // pred_fallthru
      _
    // Predicated region
    $region14: #{tpu_custom_call.1} parent=1 // pred_check
      _
    $region15: #{tpu_custom_call.1} parent=1 // pred_check_branch
      %29 = sbr.rel (0) target = $region17
    $region16: #{tpu_custom_call.1} parent=1 // pred_region
      _
    $region17: #{tpu_custom_call.1} parent=1 // pred_fallthru
      _
    // Predicated region
    $region18: #{tpu_custom_call.1} parent=1 // pred_check
      _
    $region19: #{tpu_custom_call.1} parent=1 // pred_check_branch
      %31 = sbr.rel (0) target = $region21
    $region20: #{tpu_custom_call.1} parent=1 // pred_region
      _
    $region21: #{tpu_custom_call.1} parent=1 // pred_fallthru
      _
    // Predicated region
    $region22: #{tpu_custom_call.1} parent=1 // pred_check
      _
    $region23: #{tpu_custom_call.1} parent=1 // pred_check_branch
      %33 = sbr.rel (0) target = $region25
    $region24: #{tpu_custom_call.1} parent=1 // pred_region
      %34 = dma.done [#allocation4], 2432
    $region25: #{tpu_custom_call.1} parent=1 // pred_fallthru
      _
    %v36 = vld [vmem:[#allocation3] sm:$0xf]
    %v37 = vld [vmem:[#allocation3 + $0x4] sm:$0xf]
    %v38 = vld [vmem:[#allocation3 + $0x8] sm:$0xf]
    %v39 = vld [vmem:[#allocation3 + $0xc] sm:$0xf]
    %v40 = vld [vmem:[#allocation3 + $0x10] sm:$0xf]
    %v41 = vld [vmem:[#allocation3 + $0x14] sm:$0xf]
    %v42 = vld [vmem:[#allocation3 + $0x18] sm:$0xf]
    %v43 = vld [vmem:[#allocation3 + $0x1c] sm:$0xf]
    %v44 = vld [vmem:[#allocation3 + $0x20] sm:$0xf]
    %v45 = vld [vmem:[#allocation3 + $0x24] sm:$0xf]
    %v46 = vld [vmem:[#allocation3 + $0x28] sm:$0xf]
    %v47 = vld [vmem:[#allocation3 + $0x2c] sm:$0xf]
    %v48 = vld [vmem:[#allocation3 + $0x30] sm:$0xf]
    %v49 = vld [vmem:[#allocation3 + $0x34] sm:$0xf]
    %v50 = vld [vmem:[#allocation3 + $0x38] sm:$0xf]
    %v51 = vld [vmem:[#allocation3 + $0x3c] sm:$0xf]
    %v52 = vld [vmem:[#allocation3 + $0x40] sm:$0xf]
    %v53 = vld [vmem:[#allocation3 + $0x44] sm:$0xf]
    %v54 = vld [vmem:[#allocation3 + $0x48] sm:$0xf]
    %v55 = vld [vmem:[#allocation3 + $0x4c] sm:$0xf]
    %v56 = vld [vmem:[#allocation3 + $0x50] sm:$0xf]
    %v57 = vld [vmem:[#allocation3 + $0x54] sm:$0xf]
    %v58 = vld [vmem:[#allocation3 + $0x58] sm:$0xf]
    %v59 = vld [vmem:[#allocation3 + $0x5c] sm:$0xf]
    %v60 = vld [vmem:[#allocation3 + $0x60] sm:$0xf]
    %v61 = vld [vmem:[#allocation3 + $0x64] sm:$0xf]
    %v62 = vld [vmem:[#allocation3 + $0x68] sm:$0xf]
    %v63 = vld [vmem:[#allocation3 + $0x6c] sm:$0xf]
    %v64 = vld [vmem:[#allocation3 + $0x70] sm:$0xf]
    %v65 = vld [vmem:[#allocation3 + $0x74] sm:$0xf]
    %v66 = vld [vmem:[#allocation3 + $0x78] sm:$0xf]
    %v67 = vld [vmem:[#allocation3 + $0x7c] sm:$0xf]
    %v68 = vld [vmem:[#allocation3 + $0x80] sm:$0xf]
    %v69 = vld [vmem:[#allocation3 + $0x84] sm:$0xf]
    %v70 = vld [vmem:[#allocation3 + $0x88] sm:$0xf]
    %v71 = vld [vmem:[#allocation3 + $0x8c] sm:$0xf]
    %v72 = vld [vmem:[#allocation3 + $0x90] sm:$0xf]
    %v73 = vld [vmem:[#allocation3 + $0x94] sm:$0xf]
    %v74 = vld [vmem:[%s1] sm:$0xf]
    %v75 = vld [vmem:[%s1 + $0x4] sm:$0xf]
    %v76 = vld [vmem:[%s1 + $0x8] sm:$0xf]
    %v77 = vld [vmem:[%s1 + $0xc] sm:$0xf]
    %v78 = vld [vmem:[%s1 + $0x10] sm:$0xf]
    %v79 = vld [vmem:[%s1 + $0x14] sm:$0xf]
    %v80 = vld [vmem:[%s1 + $0x18] sm:$0xf]
    %v81 = vld [vmem:[%s1 + $0x1c] sm:$0xf]
    %v82 = vld [vmem:[%s1 + $0x20] sm:$0xf]
    %v83 = vld [vmem:[%s1 + $0x24] sm:$0xf]
    %v84 = vld [vmem:[%s1 + $0x28] sm:$0xf]
    %v85 = vld [vmem:[%s1 + $0x2c] sm:$0xf]
    %v86 = vld [vmem:[%s1 + $0x30] sm:$0xf]
    %v87 = vld [vmem:[%s1 + $0x34] sm:$0xf]
    %v88 = vld [vmem:[%s1 + $0x38] sm:$0xf]
    %v89 = vld [vmem:[%s1 + $0x3c] sm:$0xf]
    %v90 = vld [vmem:[%s2] sm:$0x1]
    %v92 = vlaneseq
    %v93 = vshrl.u32 %v92, 7
    %v94 = vsub.s32 0, %v93
    %v95 = vrot.slane %v90, %v94
    %v135 = vunpack.c.l.b16 %v36
    %v136 = vunpack.c.l.b16 %v37
    %v137 = vunpack.c.l.b16 %v38
    %v138 = vunpack.c.l.b16 %v39
    %v139 = vunpack.c.l.b16 %v40
    %v140 = vunpack.c.l.b16 %v41
    %v141 = vunpack.c.l.b16 %v42
    %v142 = vunpack.c.l.b16 %v43
    %v143 = vunpack.c.l.b16 %v44
    %v144 = vunpack.c.l.b16 %v45
    %v145 = vunpack.c.l.b16 %v46
    %v146 = vunpack.c.l.b16 %v47
    %v147 = vunpack.c.l.b16 %v48
    %v148 = vunpack.c.l.b16 %v49
    %v149 = vunpack.c.l.b16 %v50
    %v150 = vunpack.c.l.b16 %v51
    %v151 = vunpack.c.l.b16 %v52
    %v152 = vunpack.c.l.b16 %v53
    %v153 = vunpack.c.l.b16 %v54
    %v154 = vunpack.c.l.b16 %v55
    %v155 = vunpack.c.l.b16 %v56
    %v156 = vunpack.c.l.b16 %v57
    %v157 = vunpack.c.l.b16 %v58
    %v158 = vunpack.c.l.b16 %v59
    %v159 = vunpack.c.l.b16 %v60
    %v160 = vunpack.c.l.b16 %v61
    %v161 = vunpack.c.l.b16 %v62
    %v162 = vunpack.c.l.b16 %v63
    %v163 = vunpack.c.l.b16 %v64
    %v164 = vunpack.c.l.b16 %v65
    %v165 = vunpack.c.l.b16 %v66
    %v166 = vunpack.c.l.b16 %v67
    %v167 = vunpack.c.l.b16 %v68
    %v168 = vunpack.c.l.b16 %v69
    %v169 = vunpack.c.l.b16 %v70
    %v170 = vunpack.c.l.b16 %v71
    %v171 = vunpack.c.l.b16 %v72
    %v172 = vunpack.c.l.b16 %v73
    %v173 = vpack.c.b16 %v136, %v135
    %v174 = vpack.c.b16 %v138, %v137
    %v175 = vpack.c.b16 %v140, %v139
    %v176 = vpack.c.b16 %v142, %v141
    %v177 = vpack.c.b16 %v144, %v143
    %v178 = vpack.c.b16 %v146, %v145
    %v179 = vpack.c.b16 %v148, %v147
    %v180 = vpack.c.b16 %v150, %v149
    %v181 = vpack.c.b16 %v152, %v151
    %v182 = vpack.c.b16 %v154, %v153
    %v183 = vpack.c.b16 %v156, %v155
    %v184 = vpack.c.b16 %v158, %v157
    %v185 = vpack.c.b16 %v160, %v159
    %v186 = vpack.c.b16 %v162, %v161
    %v187 = vpack.c.b16 %v164, %v163
    %v188 = vpack.c.b16 %v166, %v165
    %v189 = vpack.c.b16 %v168, %v167
    %v190 = vpack.c.b16 %v170, %v169
    %v191 = vpack.c.b16 %v172, %v171
    %v227 = vunpack.c.l.b16 %v74
    %v228 = vunpack.c.l.b16 %v75
    %v229 = vunpack.c.l.b16 %v76
    %v230 = vunpack.c.l.b16 %v77
    %v231 = vunpack.c.l.b16 %v78
    %v232 = vunpack.c.l.b16 %v79
    %v233 = vunpack.c.l.b16 %v80
    %v234 = vunpack.c.l.b16 %v81
    %v235 = vunpack.c.l.b16 %v82
    %v236 = vunpack.c.l.b16 %v83
    %v237 = vunpack.c.l.b16 %v84
    %v238 = vunpack.c.l.b16 %v85
    %v239 = vunpack.c.l.b16 %v86
    %v240 = vunpack.c.l.b16 %v87
    %v241 = vunpack.c.l.b16 %v88
    %v242 = vunpack.c.l.b16 %v89
    %v243 = vpack.c.b16 %v228, %v227
    %v244 = vpack.c.b16 %v230, %v229
    %v245 = vpack.c.b16 %v232, %v231
    %v246 = vpack.c.b16 %v234, %v233
    %v247 = vpack.c.b16 %v236, %v235
    %v248 = vpack.c.b16 %v238, %v237
    %v249 = vpack.c.b16 %v240, %v239
    %v250 = vpack.c.b16 %v242, %v241
    %259 = vmatprep.subr.bf16.mxu0 0
    %260 = vmatpush1.bf16.msra.mxu0 %v243
    %261 = vmatprep.subr.bf16.mxu0 0
    %262 = vmatpush1.bf16.msra.mxu0 %v244
    %263 = vmatprep.subr.bf16.mxu0 0
    %264 = vmatpush1.bf16.msra.mxu0 %v245
    %265 = vmatprep.subr.bf16.mxu0 0
    %266 = vmatpush1.bf16.msra.mxu0 %v246
    %267 = vmatprep.subr.bf16.mxu0 0
    %268 = vmatpush1.bf16.msra.mxu0 %v247
    %269 = vmatprep.subr.bf16.mxu0 0
    %270 = vmatpush1.bf16.msra.mxu0 %v248
    %271 = vmatprep.subr.bf16.mxu0 0
    %272 = vmatpush1.bf16.msra.mxu0 %v249
    %273 = vmatprep.subr.bf16.mxu0 0
    %274 = vmatpush1.bf16.msra.mxu0 %v250
    %275 = vmatprep.subr.bf16.mxu0 0
    %276 = vmatpush1.bf16.msra.mxu0 0
    %277 = vmatprep.subr.bf16.mxu0 0
    %278 = vmatpush1.bf16.msra.mxu0 0
    %279 = vmatprep.subr.bf16.mxu0 0
    %280 = vmatpush1.bf16.msra.mxu0 0
    %281 = vmatprep.subr.bf16.mxu0 0
    %282 = vmatpush1.bf16.msra.mxu0 0
    %283 = vmatprep.subr.bf16.mxu0 0
    %284 = vmatpush1.bf16.msra.mxu0 0
    %285 = vmatprep.subr.bf16.mxu0 0
    %286 = vmatpush1.bf16.msra.mxu0 0
    %287 = vmatprep.subr.bf16.mxu0 0
    %288 = vmatpush1.bf16.msra.mxu0 0
    %289 = vmatprep.subr.bf16.mxu0 0
    %290 = vmatpush1.bf16.msra.mxu0 0
    %291 = vmatprep.mubr.bf16.mxu0 0
    %292 = vmatmul.mubr.bf16.gmra.mrb[0].mxu0 %v173
    %v293 = vpop.f32.mrb[0].mxu0
    %v294 = vadd.f32 %v95, %v293
    %v295 = vpop.f32.mrb[0].mxu0
    %v296 = vpop.f32.mrb[0].mxu0
    %v297 = vadd.f32 %v95, %v296
    %v298 = vpop.f32.mrb[0].mxu0
    %299 = vmatprep.mubr.bf16.mxu0 0
    %300 = vmatmul.mubr.bf16.gmra.mrb[0].mxu0 %v174
    %v301 = vpop.f32.mrb[0].mxu0
    %v302 = vadd.f32 %v95, %v301
    %v303 = vpop.f32.mrb[0].mxu0
    %v304 = vpop.f32.mrb[0].mxu0
    %v305 = vadd.f32 %v95, %v304
    %v306 = vpop.f32.mrb[0].mxu0
    %307 = vmatprep.mubr.bf16.mxu0 0
    %308 = vmatmul.mubr.bf16.gmra.mrb[0].mxu0 %v175
    %v309 = vpop.f32.mrb[0].mxu0
    %v310 = vadd.f32 %v95, %v309
    %v311 = vpop.f32.mrb[0].mxu0
    %v312 = vpop.f32.mrb[0].mxu0
    %v313 = vadd.f32 %v95, %v312
    %v314 = vpop.f32.mrb[0].mxu0
    %315 = vmatprep.mubr.bf16.mxu0 0
    %316 = vmatmul.mubr.bf16.gmra.mrb[0].mxu0 %v176
    %v317 = vpop.f32.mrb[0].mxu0
    %v318 = vadd.f32 %v95, %v317
    %v319 = vpop.f32.mrb[0].mxu0
    %v320 = vpop.f32.mrb[0].mxu0
    %v321 = vadd.f32 %v95, %v320
    %v322 = vpop.f32.mrb[0].mxu0
    %323 = vmatprep.mubr.bf16.mxu0 0
    %324 = vmatmul.mubr.bf16.gmra.mrb[0].mxu0 %v177
    %v325 = vpop.f32.mrb[0].mxu0
    %v326 = vadd.f32 %v95, %v325
    %v327 = vpop.f32.mrb[0].mxu0
    %v328 = vpop.f32.mrb[0].mxu0
    %v329 = vadd.f32 %v95, %v328
    %v330 = vpop.f32.mrb[0].mxu0
    %331 = vmatprep.mubr.bf16.mxu0 0
    %332 = vmatmul.mubr.bf16.gmra.mrb[0].mxu0 %v178
    %v333 = vpop.f32.mrb[0].mxu0
    %v334 = vadd.f32 %v95, %v333
    %v335 = vpop.f32.mrb[0].mxu0
    %v336 = vpop.f32.mrb[0].mxu0
    %v337 = vadd.f32 %v95, %v336
    %v338 = vpop.f32.mrb[0].mxu0
    %339 = vmatprep.mubr.bf16.mxu0 0
    %340 = vmatmul.mubr.bf16.gmra.mrb[0].mxu0 %v179
    %v341 = vpop.f32.mrb[0].mxu0
    %v342 = vadd.f32 %v95, %v341
    %v343 = vpop.f32.mrb[0].mxu0
    %v344 = vpop.f32.mrb[0].mxu0
    %v345 = vadd.f32 %v95, %v344
    %v346 = vpop.f32.mrb[0].mxu0
    %347 = vmatprep.mubr.bf16.mxu0 0
    %348 = vmatmul.mubr.bf16.gmra.mrb[0].mxu0 %v180
    %v349 = vpop.f32.mrb[0].mxu0
    %v350 = vadd.f32 %v95, %v349
    %v351 = vpop.f32.mrb[0].mxu0
    %v352 = vpop.f32.mrb[0].mxu0
    %v353 = vadd.f32 %v95, %v352
    %v354 = vpop.f32.mrb[0].mxu0
    %355 = vmatprep.mubr.bf16.mxu0 0
    %356 = vmatmul.mubr.bf16.gmra.mrb[0].mxu0 %v181
    %v357 = vpop.f32.mrb[0].mxu0
    %v358 = vadd.f32 %v95, %v357
    %v359 = vpop.f32.mrb[0].mxu0
    %v360 = vpop.f32.mrb[0].mxu0
    %v361 = vadd.f32 %v95, %v360
    %v362 = vpop.f32.mrb[0].mxu0
    %363 = vmatprep.mubr.bf16.mxu0 0
    %364 = vmatmul.mubr.bf16.gmra.mrb[0].mxu0 %v182
    %v365 = vpop.f32.mrb[0].mxu0
    %v366 = vadd.f32 %v95, %v365
    %v367 = vpop.f32.mrb[0].mxu0
    %v368 = vpop.f32.mrb[0].mxu0
    %v369 = vadd.f32 %v95, %v368
    %v370 = vpop.f32.mrb[0].mxu0
    %371 = vmatprep.mubr.bf16.mxu0 0
    %372 = vmatmul.mubr.bf16.gmra.mrb[0].mxu0 %v183
    %v373 = vpop.f32.mrb[0].mxu0
    %v374 = vadd.f32 %v95, %v373
    %v375 = vpop.f32.mrb[0].mxu0
    %v376 = vpop.f32.mrb[0].mxu0
    %v377 = vadd.f32 %v95, %v376
    %v378 = vpop.f32.mrb[0].mxu0
    %379 = vmatprep.mubr.bf16.mxu0 0
    %380 = vmatmul.mubr.bf16.gmra.mrb[0].mxu0 %v184
    %v381 = vpop.f32.mrb[0].mxu0
    %v382 = vadd.f32 %v95, %v381
    %v383 = vpop.f32.mrb[0].mxu0
    %v384 = vpop.f32.mrb[0].mxu0
    %v385 = vadd.f32 %v95, %v384
    %v386 = vpop.f32.mrb[0].mxu0
    %387 = vmatprep.mubr.bf16.mxu0 0
    %388 = vmatmul.mubr.bf16.gmra.mrb[0].mxu0 %v185
    %v389 = vpop.f32.mrb[0].mxu0
    %v390 = vadd.f32 %v95, %v389
    %v391 = vpop.f32.mrb[0].mxu0
    %v392 = vpop.f32.mrb[0].mxu0
    %v393 = vadd.f32 %v95, %v392
    %v394 = vpop.f32.mrb[0].mxu0
    %395 = vmatprep.mubr.bf16.mxu0 0
    %396 = vmatmul.mubr.bf16.gmra.mrb[0].mxu0 %v186
    %v397 = vpop.f32.mrb[0].mxu0
    %v398 = vadd.f32 %v95, %v397
    %v399 = vpop.f32.mrb[0].mxu0
    %v400 = vpop.f32.mrb[0].mxu0
    %v401 = vadd.f32 %v95, %v400
    %v402 = vpop.f32.mrb[0].mxu0
    %403 = vmatprep.mubr.bf16.mxu0 0
    %404 = vmatmul.mubr.bf16.gmra.mrb[0].mxu0 %v187
    %v405 = vpop.f32.mrb[0].mxu0
    %v406 = vadd.f32 %v95, %v405
    %v407 = vpop.f32.mrb[0].mxu0
    %v408 = vpop.f32.mrb[0].mxu0
    %v409 = vadd.f32 %v95, %v408
    %v410 = vpop.f32.mrb[0].mxu0
    %411 = vmatprep.mubr.bf16.mxu0 0
    %412 = vmatmul.mubr.bf16.gmra.mrb[0].mxu0 %v188
    %v413 = vpop.f32.mrb[0].mxu0
    %v414 = vadd.f32 %v95, %v413
    %v415 = vpop.f32.mrb[0].mxu0
    %v416 = vpop.f32.mrb[0].mxu0
    %v417 = vadd.f32 %v95, %v416
    %v418 = vpop.f32.mrb[0].mxu0
    %419 = vmatprep.mubr.bf16.mxu0 0
    %420 = vmatmul.mubr.bf16.gmra.mrb[0].mxu0 %v189
    %v421 = vpop.f32.mrb[0].mxu0
    %v422 = vadd.f32 %v95, %v421
    %v423 = vpop.f32.mrb[0].mxu0
    %v424 = vpop.f32.mrb[0].mxu0
    %v425 = vadd.f32 %v95, %v424
    %v426 = vpop.f32.mrb[0].mxu0
    %427 = vmatprep.mubr.bf16.mxu0 0
    %428 = vmatmul.mubr.bf16.gmra.mrb[0].mxu0 %v190
    %v429 = vpop.f32.mrb[0].mxu0
    %v430 = vadd.f32 %v95, %v429
    %v431 = vpop.f32.mrb[0].mxu0
    %v432 = vpop.f32.mrb[0].mxu0
    %v433 = vadd.f32 %v95, %v432
    %v434 = vpop.f32.mrb[0].mxu0
    %435 = vmatprep.mubr.bf16.mxu0 0
    %436 = vmatmul.mubr.bf16.gmra.mrb[0].mxu0 %v191
    %v437 = vpop.f32.mrb[0].mxu0
    %v438 = vadd.f32 %v95, %v437
    %v439 = vpop.f32.mrb[0].mxu0
    %v440 = vpop.f32.mrb[0].mxu0
    %v441 = vadd.f32 %v95, %v440
    %v442 = vpop.f32.mrb[0].mxu0
    %443 = vdwg.mxu0
    %v444 = vmax.f32 %v294, 0.0
    %v445 = vmax.f32 %v297, 0.0
    %v446 = vmax.f32 %v302, 0.0
    %v447 = vmax.f32 %v305, 0.0
    %v448 = vmax.f32 %v310, 0.0
    %v449 = vmax.f32 %v313, 0.0
    %v450 = vmax.f32 %v318, 0.0
    %v451 = vmax.f32 %v321, 0.0
    %v452 = vmax.f32 %v326, 0.0
    %v453 = vmax.f32 %v329, 0.0
    %v454 = vmax.f32 %v334, 0.0
    %v455 = vmax.f32 %v337, 0.0
    %v456 = vmax.f32 %v342, 0.0
    %v457 = vmax.f32 %v345, 0.0
    %v458 = vmax.f32 %v350, 0.0
    %v459 = vmax.f32 %v353, 0.0
    %v460 = vmax.f32 %v358, 0.0
    %v461 = vmax.f32 %v361, 0.0
    %v462 = vmax.f32 %v366, 0.0
    %v463 = vmax.f32 %v369, 0.0
    %v464 = vmax.f32 %v374, 0.0
    %v465 = vmax.f32 %v377, 0.0
    %v466 = vmax.f32 %v382, 0.0
    %v467 = vmax.f32 %v385, 0.0
    %v468 = vmax.f32 %v390, 0.0
    %v469 = vmax.f32 %v393, 0.0
    %v470 = vmax.f32 %v398, 0.0
    %v471 = vmax.f32 %v401, 0.0
    %v472 = vmax.f32 %v406, 0.0
    %v473 = vmax.f32 %v409, 0.0
    %v474 = vmax.f32 %v414, 0.0
    %v475 = vmax.f32 %v417, 0.0
    %v476 = vmax.f32 %v422, 0.0
    %v477 = vmax.f32 %v425, 0.0
    %v478 = vmax.f32 %v430, 0.0
    %v479 = vmax.f32 %v433, 0.0
    %v480 = vmax.f32 %v438, 0.0
    %v481 = vmax.f32 %v441, 0.0
    %v482 = vld [vmem:[%s3] sm:$0x1]
    %v484 = vlaneseq
    %v485 = vshrl.u32 %v484, 7
    %v486 = vsub.s32 0, %v485
    %v487 = vrot.slane %v482, %v486
    %v489 = vmul.f32 %v444, %v487
    %v490 = vmul.f32 %v445, %v487
    %v491 = vmul.f32 %v446, %v487
    %v492 = vmul.f32 %v447, %v487
    %v493 = vmul.f32 %v448, %v487
    %v494 = vmul.f32 %v449, %v487
    %v495 = vmul.f32 %v450, %v487
    %v496 = vmul.f32 %v451, %v487
    %v497 = vmul.f32 %v452, %v487
    %v498 = vmul.f32 %v453, %v487
    %v499 = vmul.f32 %v454, %v487
    %v500 = vmul.f32 %v455, %v487
    %v501 = vmul.f32 %v456, %v487
    %v502 = vmul.f32 %v457, %v487
    %v503 = vmul.f32 %v458, %v487
    %v504 = vmul.f32 %v459, %v487
    %v505 = vmul.f32 %v460, %v487
    %v506 = vmul.f32 %v461, %v487
    %v507 = vmul.f32 %v462, %v487
    %v508 = vmul.f32 %v463, %v487
    %v509 = vmul.f32 %v464, %v487
    %v510 = vmul.f32 %v465, %v487
    %v511 = vmul.f32 %v466, %v487
    %v512 = vmul.f32 %v467, %v487
    %v513 = vmul.f32 %v468, %v487
    %v514 = vmul.f32 %v469, %v487
    %v515 = vmul.f32 %v470, %v487
    %v516 = vmul.f32 %v471, %v487
    %v517 = vmul.f32 %v472, %v487
    %v518 = vmul.f32 %v473, %v487
    %v519 = vmul.f32 %v474, %v487
    %v520 = vmul.f32 %v475, %v487
    %v521 = vmul.f32 %v476, %v487
    %v522 = vmul.f32 %v477, %v487
    %v523 = vmul.f32 %v478, %v487
    %v524 = vmul.f32 %v479, %v487
    %v525 = vmul.f32 %v480, %v487
    %v526 = vmul.f32 %v481, %v487
    %vm527 = vcmask 523264
    %v528 = vsel %vm527, %v489, 0.0
    %529 = vadd.xlane.f32.xlu0 %v528
    %v530 = vpop.xlane.xlu0 %529
    %v531 = vsel %vm527, %v490, 0.0
    %532 = vadd.xlane.f32.xlu0 %v531
    %v533 = vpop.xlane.xlu0 %532
    %v534 = vsel %vm527, %v491, 0.0
    %535 = vadd.xlane.f32.xlu0 %v534
    %v536 = vpop.xlane.xlu0 %535
    %v537 = vsel %vm527, %v492, 0.0
    %538 = vadd.xlane.f32.xlu0 %v537
    %v539 = vpop.xlane.xlu0 %538
    %v540 = vsel %vm527, %v493, 0.0
    %541 = vadd.xlane.f32.xlu0 %v540
    %v542 = vpop.xlane.xlu0 %541
    %v543 = vsel %vm527, %v494, 0.0
    %544 = vadd.xlane.f32.xlu0 %v543
    %v545 = vpop.xlane.xlu0 %544
    %v546 = vsel %vm527, %v495, 0.0
    %547 = vadd.xlane.f32.xlu0 %v546
    %v548 = vpop.xlane.xlu0 %547
    %v549 = vsel %vm527, %v496, 0.0
    %550 = vadd.xlane.f32.xlu0 %v549
    %v551 = vpop.xlane.xlu0 %550
    %v552 = vsel %vm527, %v497, 0.0
    %553 = vadd.xlane.f32.xlu0 %v552
    %v554 = vpop.xlane.xlu0 %553
    %v555 = vsel %vm527, %v498, 0.0
    %556 = vadd.xlane.f32.xlu0 %v555
    %v557 = vpop.xlane.xlu0 %556
    %v558 = vsel %vm527, %v499, 0.0
    %559 = vadd.xlane.f32.xlu0 %v558
    %v560 = vpop.xlane.xlu0 %559
    %v561 = vsel %vm527, %v500, 0.0
    %562 = vadd.xlane.f32.xlu0 %v561
    %v563 = vpop.xlane.xlu0 %562
    %v564 = vsel %vm527, %v501, 0.0
    %565 = vadd.xlane.f32.xlu0 %v564
    %v566 = vpop.xlane.xlu0 %565
    %v567 = vsel %vm527, %v502, 0.0
    %568 = vadd.xlane.f32.xlu0 %v567
    %v569 = vpop.xlane.xlu0 %568
    %v570 = vsel %vm527, %v503, 0.0
    %571 = vadd.xlane.f32.xlu0 %v570
    %v572 = vpop.xlane.xlu0 %571
    %v573 = vsel %vm527, %v504, 0.0
    %574 = vadd.xlane.f32.xlu0 %v573
    %v575 = vpop.xlane.xlu0 %574
    %v576 = vsel %vm527, %v505, 0.0
    %577 = vadd.xlane.f32.xlu0 %v576
    %v578 = vpop.xlane.xlu0 %577
    %v579 = vsel %vm527, %v506, 0.0
    %580 = vadd.xlane.f32.xlu0 %v579
    %v581 = vpop.xlane.xlu0 %580
    %v582 = vsel %vm527, %v507, 0.0
    %583 = vadd.xlane.f32.xlu0 %v582
    %v584 = vpop.xlane.xlu0 %583
    %v585 = vsel %vm527, %v508, 0.0
    %586 = vadd.xlane.f32.xlu0 %v585
    %v587 = vpop.xlane.xlu0 %586
    %v588 = vsel %vm527, %v509, 0.0
    %589 = vadd.xlane.f32.xlu0 %v588
    %v590 = vpop.xlane.xlu0 %589
    %v591 = vsel %vm527, %v510, 0.0
    %592 = vadd.xlane.f32.xlu0 %v591
    %v593 = vpop.xlane.xlu0 %592
    %v594 = vsel %vm527, %v511, 0.0
    %595 = vadd.xlane.f32.xlu0 %v594
    %v596 = vpop.xlane.xlu0 %595
    %v597 = vsel %vm527, %v512, 0.0
    %598 = vadd.xlane.f32.xlu0 %v597
    %v599 = vpop.xlane.xlu0 %598
    %v600 = vsel %vm527, %v513, 0.0
    %601 = vadd.xlane.f32.xlu0 %v600
    %v602 = vpop.xlane.xlu0 %601
    %v603 = vsel %vm527, %v514, 0.0
    %604 = vadd.xlane.f32.xlu0 %v603
    %v605 = vpop.xlane.xlu0 %604
    %v606 = vsel %vm527, %v515, 0.0
    %607 = vadd.xlane.f32.xlu0 %v606
    %v608 = vpop.xlane.xlu0 %607
    %v609 = vsel %vm527, %v516, 0.0
    %610 = vadd.xlane.f32.xlu0 %v609
    %v611 = vpop.xlane.xlu0 %610
    %v612 = vsel %vm527, %v517, 0.0
    %613 = vadd.xlane.f32.xlu0 %v612
    %v614 = vpop.xlane.xlu0 %613
    %v615 = vsel %vm527, %v518, 0.0
    %616 = vadd.xlane.f32.xlu0 %v615
    %v617 = vpop.xlane.xlu0 %616
    %v618 = vsel %vm527, %v519, 0.0
    %619 = vadd.xlane.f32.xlu0 %v618
    %v620 = vpop.xlane.xlu0 %619
    %v621 = vsel %vm527, %v520, 0.0
    %622 = vadd.xlane.f32.xlu0 %v621
    %v623 = vpop.xlane.xlu0 %622
    %v624 = vsel %vm527, %v521, 0.0
    %625 = vadd.xlane.f32.xlu0 %v624
    %v626 = vpop.xlane.xlu0 %625
    %v627 = vsel %vm527, %v522, 0.0
    %628 = vadd.xlane.f32.xlu0 %v627
    %v629 = vpop.xlane.xlu0 %628
    %v630 = vsel %vm527, %v523, 0.0
    %631 = vadd.xlane.f32.xlu0 %v630
    %v632 = vpop.xlane.xlu0 %631
    %v633 = vsel %vm527, %v524, 0.0
    %634 = vadd.xlane.f32.xlu0 %v633
    %v635 = vpop.xlane.xlu0 %634
    %v636 = vsel %vm527, %v525, 0.0
    %637 = vadd.xlane.f32.xlu0 %v636
    %v638 = vpop.xlane.xlu0 %637
    %v639 = vsel %vm527, %v526, 0.0
    %640 = vadd.xlane.f32.xlu0 %v639
    %v641 = vpop.xlane.xlu0 %640
    %s642 = sld [smem:[#allocation2]]
    %v643 = vstv %s642
    %v644 = vadd.f32 %v530, %v643
    %v645 = vadd.f32 %v533, %v643
    %v646 = vadd.f32 %v536, %v643
    %v647 = vadd.f32 %v539, %v643
    %v648 = vadd.f32 %v542, %v643
    %v649 = vadd.f32 %v545, %v643
    %v650 = vadd.f32 %v548, %v643
    %v651 = vadd.f32 %v551, %v643
    %v652 = vadd.f32 %v554, %v643
    %v653 = vadd.f32 %v557, %v643
    %v654 = vadd.f32 %v560, %v643
    %v655 = vadd.f32 %v563, %v643
    %v656 = vadd.f32 %v566, %v643
    %v657 = vadd.f32 %v569, %v643
    %v658 = vadd.f32 %v572, %v643
    %v659 = vadd.f32 %v575, %v643
    %v660 = vadd.f32 %v578, %v643
    %v661 = vadd.f32 %v581, %v643
    %v662 = vadd.f32 %v584, %v643
    %v663 = vadd.f32 %v587, %v643
    %v664 = vadd.f32 %v590, %v643
    %v665 = vadd.f32 %v593, %v643
    %v666 = vadd.f32 %v596, %v643
    %v667 = vadd.f32 %v599, %v643
    %v668 = vadd.f32 %v602, %v643
    %v669 = vadd.f32 %v605, %v643
    %v670 = vadd.f32 %v608, %v643
    %v671 = vadd.f32 %v611, %v643
    %v672 = vadd.f32 %v614, %v643
    %v673 = vadd.f32 %v617, %v643
    %v674 = vadd.f32 %v620, %v643
    %v675 = vadd.f32 %v623, %v643
    %v676 = vadd.f32 %v626, %v643
    %v677 = vadd.f32 %v629, %v643
    %v678 = vadd.f32 %v632, %v643
    %v679 = vadd.f32 %v635, %v643
    %v680 = vadd.f32 %v638, %v643
    %v681 = vadd.f32 %v641, %v643
    %v682 = vsub.f32 0.0, %v644
    %v683 = vsub.f32 0.0, %v645
    %v684 = vsub.f32 0.0, %v646
    %v685 = vsub.f32 0.0, %v647
    %v686 = vsub.f32 0.0, %v648
    %v687 = vsub.f32 0.0, %v649
    %v688 = vsub.f32 0.0, %v650
    %v689 = vsub.f32 0.0, %v651
    %v690 = vsub.f32 0.0, %v652
    %v691 = vsub.f32 0.0, %v653
    %v692 = vsub.f32 0.0, %v654
    %v693 = vsub.f32 0.0, %v655
    %v694 = vsub.f32 0.0, %v656
    %v695 = vsub.f32 0.0, %v657
    %v696 = vsub.f32 0.0, %v658
    %v697 = vsub.f32 0.0, %v659
    %v698 = vsub.f32 0.0, %v660
    %v699 = vsub.f32 0.0, %v661
    %v700 = vsub.f32 0.0, %v662
    %v701 = vsub.f32 0.0, %v663
    %v702 = vsub.f32 0.0, %v664
    %v703 = vsub.f32 0.0, %v665
    %v704 = vsub.f32 0.0, %v666
    %v705 = vsub.f32 0.0, %v667
    %v706 = vsub.f32 0.0, %v668
    %v707 = vsub.f32 0.0, %v669
    %v708 = vsub.f32 0.0, %v670
    %v709 = vsub.f32 0.0, %v671
    %v710 = vsub.f32 0.0, %v672
    %v711 = vsub.f32 0.0, %v673
    %v712 = vsub.f32 0.0, %v674
    %v713 = vsub.f32 0.0, %v675
    %v714 = vsub.f32 0.0, %v676
    %v715 = vsub.f32 0.0, %v677
    %v716 = vsub.f32 0.0, %v678
    %v717 = vsub.f32 0.0, %v679
    %v718 = vsub.f32 0.0, %v680
    %v719 = vsub.f32 0.0, %v681
    %v720 = vmul.f32 %v682, 1.442695
    %v721 = vpow.pop %v720
    %v722 = vmul.f32 %v683, 1.442695
    %v723 = vpow.pop %v722
    %v724 = vmul.f32 %v684, 1.442695
    %v725 = vpow.pop %v724
    %v726 = vmul.f32 %v685, 1.442695
    %v727 = vpow.pop %v726
    %v728 = vmul.f32 %v686, 1.442695
    %v729 = vpow.pop %v728
    %v730 = vmul.f32 %v687, 1.442695
    %v731 = vpow.pop %v730
    %v732 = vmul.f32 %v688, 1.442695
    %v733 = vpow.pop %v732
    %v734 = vmul.f32 %v689, 1.442695
    %v735 = vpow.pop %v734
    %v736 = vmul.f32 %v690, 1.442695
    %v737 = vpow.pop %v736
    %v738 = vmul.f32 %v691, 1.442695
    %v739 = vpow.pop %v738
    %v740 = vmul.f32 %v692, 1.442695
    %v741 = vpow.pop %v740
    %v742 = vmul.f32 %v693, 1.442695
    %v743 = vpow.pop %v742
    %v744 = vmul.f32 %v694, 1.442695
    %v745 = vpow.pop %v744
    %v746 = vmul.f32 %v695, 1.442695
    %v747 = vpow.pop %v746
    %v748 = vmul.f32 %v696, 1.442695
    %v749 = vpow.pop %v748
    %v750 = vmul.f32 %v697, 1.442695
    %v751 = vpow.pop %v750
    %v752 = vmul.f32 %v698, 1.442695
    %v753 = vpow.pop %v752
    %v754 = vmul.f32 %v699, 1.442695
    %v755 = vpow.pop %v754
    %v756 = vmul.f32 %v700, 1.442695
    %v757 = vpow.pop %v756
    %v758 = vmul.f32 %v701, 1.442695
    %v759 = vpow.pop %v758
    %v760 = vmul.f32 %v702, 1.442695
    %v761 = vpow.pop %v760
    %v762 = vmul.f32 %v703, 1.442695
    %v763 = vpow.pop %v762
    %v764 = vmul.f32 %v704, 1.442695
    %v765 = vpow.pop %v764
    %v766 = vmul.f32 %v705, 1.442695
    %v767 = vpow.pop %v766
    %v768 = vmul.f32 %v706, 1.442695
    %v769 = vpow.pop %v768
    %v770 = vmul.f32 %v707, 1.442695
    %v771 = vpow.pop %v770
    %v772 = vmul.f32 %v708, 1.442695
    %v773 = vpow.pop %v772
    %v774 = vmul.f32 %v709, 1.442695
    %v775 = vpow.pop %v774
    %v776 = vmul.f32 %v710, 1.442695
    %v777 = vpow.pop %v776
    %v778 = vmul.f32 %v711, 1.442695
    %v779 = vpow.pop %v778
    %v780 = vmul.f32 %v712, 1.442695
    %v781 = vpow.pop %v780
    %v782 = vmul.f32 %v713, 1.442695
    %v783 = vpow.pop %v782
    %v784 = vmul.f32 %v714, 1.442695
    %v785 = vpow.pop %v784
    %v786 = vmul.f32 %v715, 1.442695
    %v787 = vpow.pop %v786
    %v788 = vmul.f32 %v716, 1.442695
    %v789 = vpow.pop %v788
    %v790 = vmul.f32 %v717, 1.442695
    %v791 = vpow.pop %v790
    %v792 = vmul.f32 %v718, 1.442695
    %v793 = vpow.pop %v792
    %v794 = vmul.f32 %v719, 1.442695
    %v795 = vpow.pop %v794
    %v796 = vadd.f32 %v721, 1.0
    %v797 = vadd.f32 %v723, 1.0
    %v798 = vadd.f32 %v725, 1.0
    %v799 = vadd.f32 %v727, 1.0
    %v800 = vadd.f32 %v729, 1.0
    %v801 = vadd.f32 %v731, 1.0
    %v802 = vadd.f32 %v733, 1.0
    %v803 = vadd.f32 %v735, 1.0
    %v804 = vadd.f32 %v737, 1.0
    %v805 = vadd.f32 %v739, 1.0
    %v806 = vadd.f32 %v741, 1.0
    %v807 = vadd.f32 %v743, 1.0
    %v808 = vadd.f32 %v745, 1.0
    %v809 = vadd.f32 %v747, 1.0
    %v810 = vadd.f32 %v749, 1.0
    %v811 = vadd.f32 %v751, 1.0
    %v812 = vadd.f32 %v753, 1.0
    %v813 = vadd.f32 %v755, 1.0
    %v814 = vadd.f32 %v757, 1.0
    %v815 = vadd.f32 %v759, 1.0
    %v816 = vadd.f32 %v761, 1.0
    %v817 = vadd.f32 %v763, 1.0
    %v818 = vadd.f32 %v765, 1.0
    %v819 = vadd.f32 %v767, 1.0
    %v820 = vadd.f32 %v769, 1.0
    %v821 = vadd.f32 %v771, 1.0
    %v822 = vadd.f32 %v773, 1.0
    %v823 = vadd.f32 %v775, 1.0
    %v824 = vadd.f32 %v777, 1.0
    %v825 = vadd.f32 %v779, 1.0
    %v826 = vadd.f32 %v781, 1.0
    %v827 = vadd.f32 %v783, 1.0
    %v828 = vadd.f32 %v785, 1.0
    %v829 = vadd.f32 %v787, 1.0
    %v830 = vadd.f32 %v789, 1.0
    %v831 = vadd.f32 %v791, 1.0
    %v832 = vadd.f32 %v793, 1.0
    %v833 = vadd.f32 %v795, 1.0
    %v834 = vrcp.pop %v796
    %v835 = vrcp.pop %v797
    %v836 = vrcp.pop %v798
    %v837 = vrcp.pop %v799
    %v838 = vrcp.pop %v800
    %v839 = vrcp.pop %v801
    %v840 = vrcp.pop %v802
    %v841 = vrcp.pop %v803
    %v842 = vrcp.pop %v804
    %v843 = vrcp.pop %v805
    %v844 = vrcp.pop %v806
    %v845 = vrcp.pop %v807
    %v846 = vrcp.pop %v808
    %v847 = vrcp.pop %v809
    %v848 = vrcp.pop %v810
    %v849 = vrcp.pop %v811
    %v850 = vrcp.pop %v812
    %v851 = vrcp.pop %v813
    %v852 = vrcp.pop %v814
    %v853 = vrcp.pop %v815
    %v854 = vrcp.pop %v816
    %v855 = vrcp.pop %v817
    %v856 = vrcp.pop %v818
    %v857 = vrcp.pop %v819
    %v858 = vrcp.pop %v820
    %v859 = vrcp.pop %v821
    %v860 = vrcp.pop %v822
    %v861 = vrcp.pop %v823
    %v862 = vrcp.pop %v824
    %v863 = vrcp.pop %v825
    %v864 = vrcp.pop %v826
    %v865 = vrcp.pop %v827
    %v866 = vrcp.pop %v828
    %v867 = vrcp.pop %v829
    %v868 = vrcp.pop %v830
    %v869 = vrcp.pop %v831
    %v870 = vrcp.pop %v832
    %v871 = vrcp.pop %v833
    %vm872 = vcmask 7168
    %873 = vst.msk [vmem:[%s5] sm:$0xff] %vm872, %v834
    %874 = vst.msk [vmem:[%s5 + $0x8] sm:$0xff] %vm872, %v835
    %875 = vst.msk [vmem:[%s5 + $0x10] sm:$0xff] %vm872, %v836
    %876 = vst.msk [vmem:[%s5 + $0x18] sm:$0xff] %vm872, %v837
    %877 = vst.msk [vmem:[%s5 + $0x20] sm:$0xff] %vm872, %v838
    %878 = vst.msk [vmem:[%s5 + $0x28] sm:$0xff] %vm872, %v839
    %879 = vst.msk [vmem:[%s5 + $0x30] sm:$0xff] %vm872, %v840
    %880 = vst.msk [vmem:[%s5 + $0x38] sm:$0xff] %vm872, %v841
    %881 = vst.msk [vmem:[%s5 + $0x40] sm:$0xff] %vm872, %v842
    %882 = vst.msk [vmem:[%s5 + $0x48] sm:$0xff] %vm872, %v843
    %883 = vst.msk [vmem:[%s5 + $0x50] sm:$0xff] %vm872, %v844
    %884 = vst.msk [vmem:[%s5 + $0x58] sm:$0xff] %vm872, %v845
    %885 = vst.msk [vmem:[%s5 + $0x60] sm:$0xff] %vm872, %v846
    %886 = vst.msk [vmem:[%s5 + $0x68] sm:$0xff] %vm872, %v847
    %887 = vst.msk [vmem:[%s5 + $0x70] sm:$0xff] %vm872, %v848
    %888 = vst.msk [vmem:[%s5 + $0x78] sm:$0xff] %vm872, %v849
    %889 = vst.msk [vmem:[%s5 + $0x80] sm:$0xff] %vm872, %v850
    %890 = vst.msk [vmem:[%s5 + $0x88] sm:$0xff] %vm872, %v851
    %891 = vst.msk [vmem:[%s5 + $0x90] sm:$0xff] %vm872, %v852
    %892 = vst.msk [vmem:[%s5 + $0x98] sm:$0xff] %vm872, %v853
    %893 = vst.msk [vmem:[%s5 + $0xa0] sm:$0xff] %vm872, %v854
    %894 = vst.msk [vmem:[%s5 + $0xa8] sm:$0xff] %vm872, %v855
    %895 = vst.msk [vmem:[%s5 + $0xb0] sm:$0xff] %vm872, %v856
    %896 = vst.msk [vmem:[%s5 + $0xb8] sm:$0xff] %vm872, %v857
    %897 = vst.msk [vmem:[%s5 + $0xc0] sm:$0xff] %vm872, %v858
    %898 = vst.msk [vmem:[%s5 + $0xc8] sm:$0xff] %vm872, %v859
    %899 = vst.msk [vmem:[%s5 + $0xd0] sm:$0xff] %vm872, %v860
    %900 = vst.msk [vmem:[%s5 + $0xd8] sm:$0xff] %vm872, %v861
    %901 = vst.msk [vmem:[%s5 + $0xe0] sm:$0xff] %vm872, %v862
    %902 = vst.msk [vmem:[%s5 + $0xe8] sm:$0xff] %vm872, %v863
    %903 = vst.msk [vmem:[%s5 + $0xf0] sm:$0xff] %vm872, %v864
    %904 = vst.msk [vmem:[%s5 + $0xf8] sm:$0xff] %vm872, %v865
    %905 = vst.msk [vmem:[%s5 + $0x100] sm:$0xff] %vm872, %v866
    %906 = vst.msk [vmem:[%s5 + $0x108] sm:$0xff] %vm872, %v867
    %907 = vst.msk [vmem:[%s5 + $0x110] sm:$0xff] %vm872, %v868
    %908 = vst.msk [vmem:[%s5 + $0x118] sm:$0xff] %vm872, %v869
    %909 = vst.msk [vmem:[%s5 + $0x120] sm:$0xff] %vm872, %v870
    %910 = vst.msk [vmem:[%s5 + $0x128] sm:$0xff] %vm872, %v871
    // Predicated region
    $region26: #{tpu_custom_call.1} parent=1 // pred_check
      _
    $region27: #{tpu_custom_call.1} parent=1 // pred_check_branch
      %912 = sbr.rel (0) target = $region29
    $region28: #{tpu_custom_call.1} parent=1 // pred_region
      _
    $region29: #{tpu_custom_call.1} parent=1 // pred_fallthru
      _
    // Predicated region
    $region30: #{tpu_custom_call.1} parent=1 // pred_check
      _
    $region31: #{tpu_custom_call.1} parent=1 // pred_check_branch
      %914 = sbr.rel (0) target = $region33
    $region32: #{tpu_custom_call.1} parent=1 // pred_region
      _
    $region33: #{tpu_custom_call.1} parent=1 // pred_fallthru
      _
    %915 = vsyncpa [#allocation4], 1

</llo_original>
